<compile_context>
chip_gen: v5e
topology: v5e:2x2
jax: 0.10.0
libtpu: 0.0.40
codegen_flags: <defaults>
</compile_context>

<pallas_src>
import functools

import jax
import jax.numpy as jnp
from jax import lax
from jax.experimental import pallas as pl
from jax.experimental.pallas import tpu as pltpu


def _focal_loss_kernel(x_ref, t_ref, a_ref, out_ref, *scratch,
                       gamma, reduction, n_valid, tile_n, inv_n, apply_mask):
    i = pl.program_id(0)

    x = x_ref[...].astype(jnp.float32)      # (C, T) logits, classes on sublanes
    t = t_ref[...]                          # (1, T) int32 targets
    a = a_ref[...].astype(jnp.float32)      # (C, 1) class weights

    # Numerically stable log-softmax denominator (reduce over class/sublane axis).
    m = jnp.max(x, axis=0, keepdims=True)                                # (1, T)
    lse = jnp.log(jnp.sum(jnp.exp(x - m), axis=0, keepdims=True)) + m    # (1, T)

    # Gather target logit / target class weight via a one-hot compare (no gather).
    cls = lax.broadcasted_iota(jnp.int32, x.shape, 0)                    # (C, T)
    onehot = cls == t                                                    # (C, T)
    tgt_logit = jnp.sum(jnp.where(onehot, x, 0.0), axis=0, keepdims=True)
    w = jnp.sum(jnp.where(onehot, a, 0.0), axis=0, keepdims=True)

    # F.cross_entropy(..., weight=alpha, reduction='none')
    ce = w * (lse - tgt_logit)                                           # (1, T)
    pt = jnp.exp(-ce)
    u = 1.0 - pt

    # Focal modulation: integer gamma -> repeated VPU multiplies, no pow/EUP.
    if float(gamma).is_integer() and gamma >= 0:
        g = int(gamma)
        if g == 0:
            mod = jnp.ones_like(u)
        else:
            mod = u
            for _ in range(g - 1):
                mod = mod * u
    else:
        mod = u ** gamma
    focal = mod * ce                                                     # (1, T)

    if apply_mask:  # zero contribution of rows added by lane padding
        col = lax.broadcasted_iota(jnp.int32, focal.shape, 1) + i * tile_n
        focal = jnp.where(col < n_valid, focal, 0.0)

    if reduction == "none":
        out_ref[...] = focal                                             # lane-dense store
    else:
        acc_ref = scratch[0]                                             # (1, T) f32 VMEM

        @pl.when(i == 0)
        def _():
            acc_ref[...] = jnp.zeros_like(acc_ref)

        acc_ref[...] += focal                                            # VPU-only per step

        @pl.when(i == pl.num_programs(0) - 1)
        def _():
            total = jnp.sum(acc_ref[...])                                # one XLU reduce total
            if reduction == "mean":
                total = total * inv_n                                    # multiply, no divide
            out_ref[0, 0] = total


def focal_loss(inputs, targets, alpha=None, gamma=2.0, reduction="mean"):
    """Pallas equivalent of FocalLoss(alpha, gamma, reduction)(inputs, targets)."""
    n, c = inputs.shape
    dtype = inputs.dtype
    itemsize = jnp.dtype(dtype).itemsize

    if alpha is None:
        alpha_arr = jnp.ones((c,), jnp.float32)
    else:
        alpha_arr = jnp.asarray(alpha, jnp.float32)

    # Lane-dense transposed layout: classes -> sublanes, samples -> lanes.
    # Keep native input dtype (cast to f32 inside the kernel after load).
    x_t = inputs.T                                # (C, N)
    t_t = targets.reshape(1, n).astype(jnp.int32)  # (1, N)
    a_t = alpha_arr.reshape(c, 1)                  # (C, 1)

    # Row tile: multiple of 128, sized so double-buffered logit blocks stay
    # small (safe under v7x's 64 MiB physical / 32 MiB scoped VMEM and with
    # plenty of headroom on v5e/v6e).
    budget = 4 * 1024 * 1024                       # per-buffer logit bytes
    tile_n = (budget // max(1, c * itemsize)) // 128 * 128
    n_lane = ((n + 127) // 128) * 128              # smallest lane-aligned cover of N
    tile_n = int(max(128, min(2048, tile_n, n_lane)))

    n_pad = ((n + tile_n - 1) // tile_n) * tile_n
    if n_pad != n:
        x_t = jnp.pad(x_t, ((0, 0), (0, n_pad - n)))
        t_t = jnp.pad(t_t, ((0, 0), (0, n_pad - n)))
    grid = (n_pad // tile_n,)

    # TODO(synk): out-of-range target indices silently contribute ~0 loss here
    # instead of raising like PyTorch; callers must guarantee 0 <= target < C.
    apply_mask = (n_pad != n) and (reduction != "none")
    kernel = functools.partial(
        _focal_loss_kernel,
        gamma=float(gamma), reduction=reduction, n_valid=n, tile_n=tile_n,
        inv_n=1.0 / float(n), apply_mask=apply_mask,
    )

    in_specs = [
        pl.BlockSpec((c, tile_n), lambda i: (0, i)),   # logits tiles (C, T)
        pl.BlockSpec((1, tile_n), lambda i: (0, i)),   # target tiles (1, T)
        pl.BlockSpec((c, 1), lambda i: (0, 0)),        # alpha (resident)
    ]

    if reduction in ("mean", "sum"):
        out_shape = jax.ShapeDtypeStruct((1, 1), jnp.float32)
        out_specs = pl.BlockSpec((1, 1), lambda i: (0, 0),
                                 memory_space=pltpu.SMEM)
        scratch_shapes = [pltpu.VMEM((1, tile_n), jnp.float32)]
        dims = ("arbitrary",)                          # resident accumulator
    else:
        out_shape = jax.ShapeDtypeStruct((1, n_pad), jnp.float32)
        out_specs = pl.BlockSpec((1, tile_n), lambda i: (0, i))
        scratch_shapes = []
        dims = ("parallel",)                           # megacore-shardable on v7x

    cost = pl.CostEstimate(
        flops=int(n * (6 * c + 16)),
        transcendentals=int(n * (c + 3)),
        bytes_accessed=int(n * c * itemsize + n * 4 + c * 4
                           + (4 if reduction != "none" else n * 4)),
    )

    res = pl.pallas_call(
        kernel,
        out_shape=out_shape,
        grid=grid,
        in_specs=in_specs,
        out_specs=out_specs,
        scratch_shapes=scratch_shapes,
        compiler_params=pltpu.CompilerParams(
            dimension_semantics=dims,
            vmem_limit_bytes=32 * 1024 * 1024,
        ),
        cost_estimate=cost,
    )(x_t, t_t, a_t)

    if reduction in ("mean", "sum"):
        return res[0, 0]
    return res[0, :n]


def _focal_loss_ref(inputs, targets, alpha=None, gamma=2.0, reduction="mean"):
    """Pure-JAX reference matching PyTorch semantics."""
    x = inputs.astype(jnp.float32)
    logp = jax.nn.log_softmax(x, axis=-1)
    n, c = x.shape
    if alpha is None:
        alpha = jnp.ones((c,), jnp.float32)
    else:
        alpha = jnp.asarray(alpha, jnp.float32)
    nll = -jnp.take_along_axis(logp, targets[:, None], axis=-1)[:, 0]
    ce = alpha[targets] * nll
    pt = jnp.exp(-ce)
    focal = (1.0 - pt) ** gamma * ce
    if reduction == "mean":
        return focal.mean()
    if reduction == "sum":
        return focal.sum()
    return focal


if __name__ == "__main__":
    key = jax.random.PRNGKey(0)
    k1, k2, k3, k4 = jax.random.split(key, 4)

    # Small multiclass problem matching the training script: 16 samples, 8 classes.
    N, C = 16, 8
    logits = jax.random.normal(k1, (N, C), dtype=jnp.float32) * 2.0
    targets = jax.random.randint(k2, (N,), 0, C, dtype=jnp.int32)
    alpha = jnp.linspace(0.5, 1.5, C).astype(jnp.float32)

    out = jax.block_until_ready(
        focal_loss(logits, targets, alpha=alpha, gamma=2.0, reduction="mean"))
    ref = _focal_loss_ref(logits, targets, alpha=alpha, gamma=2.0, reduction="mean")
    assert jnp.allclose(out, ref, rtol=1e-5, atol=1e-5), (out, ref)

    # Larger problem exercising multiple grid steps + row padding + all reductions.
    N2, C2 = 4500, 8
    logits2 = jax.random.normal(k3, (N2, C2), dtype=jnp.float32) * 2.0
    targets2 = jax.random.randint(k4, (N2,), 0, C2, dtype=jnp.int32)

    for red in ("mean", "sum", "none"):
        o = jax.block_until_ready(
            focal_loss(logits2, targets2, alpha=None, gamma=2.0, reduction=red))
        r = _focal_loss_ref(logits2, targets2, alpha=None, gamma=2.0, reduction=red)
        assert o.shape == r.shape, (red, o.shape, r.shape)
        assert jnp.allclose(o, r, rtol=1e-4, atol=1e-5), (red, o, r)

    print("KERNEL_OK")
</pallas_src>

<mosaic_0001>
module attributes {stable_mosaic.version = 11 : i64} {
  func.func @_focal_loss_kernel(%arg0: i32, %arg1: memref<8x128xf32, #tpu.memory_space<vmem>>, %arg2: memref<1x128xi32, #tpu.memory_space<vmem>>, %arg3: memref<8x1xf32, #tpu.memory_space<vmem>>, %arg4: memref<1x1xf32, #tpu.memory_space<smem>>, %arg5: memref<1x128xf32, #tpu.memory_space<vmem>>) attributes {dimension_semantics = [#tpu.dimension_semantics<arbitrary>], iteration_bounds = array<i64: 1>, scalar_prefetch = 0 : i64, scratch_operands = 1 : i64, tpu.core_type = #tpu.core_type<tc>, window_params = [{transform_indices = @transform_0, window_bounds = array<i64: 8, 128>}, {transform_indices = @transform_1, window_bounds = array<i64: 1, 128>}, {pipeline_mode = #tpu.pipeline_mode<synchronous>, transform_indices = @transform_2, window_bounds = array<i64: 8, 1>}, {transform_indices = @transform_3, window_bounds = array<i64: 1, 1>}]} {
    %c0 = arith.constant 0 : index
    %c0_0 = arith.constant 0 : index
    %0 = vector.load %arg1[%c0, %c0_0] : memref<8x128xf32, #tpu.memory_space<vmem>>, vector<8x128xf32>
    %c0_1 = arith.constant 0 : index
    %c0_2 = arith.constant 0 : index
    %1 = vector.load %arg2[%c0_1, %c0_2] : memref<1x128xi32, #tpu.memory_space<vmem>>, vector<1x128xi32>
    %c0_3 = arith.constant 0 : index
    %c0_4 = arith.constant 0 : index
    %2 = vector.load %arg3[%c0_3, %c0_4] : memref<8x1xf32, #tpu.memory_space<vmem>>, vector<8x1xf32>
    %cst = arith.constant dense<0xFF800000> : vector<128xf32>
    %3 = vector.multi_reduction <maximumf>, %0, %cst [0] : vector<8x128xf32> to vector<128xf32>
    %4 = vector.shape_cast %3 : vector<128xf32> to vector<1x128xf32>
    %5 = vector.broadcast %4 : vector<1x128xf32> to vector<8x128xf32>
    %6 = arith.subf %0, %5 : vector<8x128xf32>
    %7 = math.exp %6 : vector<8x128xf32>
    %cst_5 = arith.constant dense<0.000000e+00> : vector<128xf32>
    %8 = vector.multi_reduction <add>, %7, %cst_5 [0] : vector<8x128xf32> to vector<128xf32>
    %9 = vector.shape_cast %8 : vector<128xf32> to vector<1x128xf32>
    %10 = math.log %9 : vector<1x128xf32>
    %11 = arith.addf %10, %4 : vector<1x128xf32>
    %12 = tpu.iota {dimensions = array<i32: 0>} : vector<8x128xi32>
    %13 = vector.broadcast %1 : vector<1x128xi32> to vector<8x128xi32>
    %14 = arith.cmpi eq, %12, %13 : vector<8x128xi32>
    %cst_6 = arith.constant 0.000000e+00 : f32
    %15 = vector.broadcast %cst_6 : f32 to vector<8x128xf32>
    %16 = arith.select %14, %0, %15 : vector<8x128xi1>, vector<8x128xf32>
    %cst_7 = arith.constant dense<0.000000e+00> : vector<128xf32>
    %17 = vector.multi_reduction <add>, %16, %cst_7 [0] : vector<8x128xf32> to vector<128xf32>
    %18 = vector.shape_cast %17 : vector<128xf32> to vector<1x128xf32>
    %cst_8 = arith.constant 0.000000e+00 : f32
    %19 = vector.shape_cast %2 : vector<8x1xf32> to vector<8x1xf32>
    %20 = vector.broadcast %19 : vector<8x1xf32> to vector<8x128xf32>
    %21 = vector.broadcast %cst_8 : f32 to vector<8x128xf32>
    %22 = arith.select %14, %20, %21 : vector<8x128xi1>, vector<8x128xf32>
    %cst_9 = arith.constant dense<0.000000e+00> : vector<128xf32>
    %23 = vector.multi_reduction <add>, %22, %cst_9 [0] : vector<8x128xf32> to vector<128xf32>
    %24 = vector.shape_cast %23 : vector<128xf32> to vector<1x128xf32>
    %25 = arith.subf %11, %18 : vector<1x128xf32>
    %26 = arith.mulf %24, %25 : vector<1x128xf32>
    %cst_10 = arith.constant 0.000000e+00 : f32
    %27 = vector.broadcast %cst_10 : f32 to vector<1x128xf32>
    %28 = arith.subf %27, %26 : vector<1x128xf32>
    %29 = math.exp %28 : vector<1x128xf32>
    %cst_11 = arith.constant 1.000000e+00 : f32
    %30 = vector.broadcast %cst_11 : f32 to vector<1x128xf32>
    %31 = arith.subf %30, %29 : vector<1x128xf32>
    %32 = arith.mulf %31, %31 : vector<1x128xf32>
    %33 = arith.mulf %32, %26 : vector<1x128xf32>
    %34 = tpu.iota {dimensions = array<i32: 1>} : vector<1x128xi32>
    %c128_i32 = arith.constant 128 : i32
    %35 = arith.muli %arg0, %c128_i32 : i32
    %36 = vector.broadcast %35 : i32 to vector<1x128xi32>
    %37 = arith.addi %34, %36 : vector<1x128xi32>
    %c16_i32 = arith.constant 16 : i32
    %38 = vector.broadcast %c16_i32 : i32 to vector<1x128xi32>
    %39 = arith.cmpi slt, %37, %38 : vector<1x128xi32>
    %cst_12 = arith.constant 0.000000e+00 : f32
    %40 = vector.broadcast %cst_12 : f32 to vector<1x128xf32>
    %41 = arith.select %39, %33, %40 : vector<1x128xi1>, vector<1x128xf32>
    %c0_i32 = arith.constant 0 : i32
    %42 = arith.cmpi eq, %arg0, %c0_i32 : i32
    %43 = arith.extui %42 : i1 to i32
    %c0_i32_13 = arith.constant 0 : i32
    %44 = arith.cmpi ne, %43, %c0_i32_13 : i32
    scf.if %44 {
      %cst_20 = arith.constant 0.000000e+00 : f32
      %51 = vector.broadcast %cst_20 : f32 to vector<1x128xf32>
      %c0_21 = arith.constant 0 : index
      %c0_22 = arith.constant 0 : index
      %52 = vector.load %arg5[%c0_21, %c0_22] : memref<1x128xf32, #tpu.memory_space<vmem>>, vector<1x128xf32>
      tpu.vector_store %arg5[%c0_21, %c0_22], %51 {strides = array<i32>} : memref<1x128xf32, #tpu.memory_space<vmem>>, vector<1x128xf32>,
    } else {
    }
    %c0_14 = arith.constant 0 : index
    %c0_15 = arith.constant 0 : index
    %45 = vector.load %arg5[%c0_14, %c0_15] : memref<1x128xf32, #tpu.memory_space<vmem>>, vector<1x128xf32>
    %46 = arith.addf %45, %41 : vector<1x128xf32>
    %c0_16 = arith.constant 0 : index
    %c0_17 = arith.constant 0 : index
    %47 = vector.load %arg5[%c0_16, %c0_17] : memref<1x128xf32, #tpu.memory_space<vmem>>, vector<1x128xf32>
    tpu.vector_store %arg5[%c0_16, %c0_17], %46 {strides = array<i32>} : memref<1x128xf32, #tpu.memory_space<vmem>>, vector<1x128xf32>,
    %c0_i32_18 = arith.constant 0 : i32
    %48 = arith.cmpi eq, %arg0, %c0_i32_18 : i32
    %49 = arith.extui %48 : i1 to i32
    %c0_i32_19 = arith.constant 0 : i32
    %50 = arith.cmpi ne, %49, %c0_i32_19 : i32
    scf.if %50 {
      %c0_20 = arith.constant 0 : index
      %c0_21 = arith.constant 0 : index
      %51 = vector.load %arg5[%c0_20, %c0_21] : memref<1x128xf32, #tpu.memory_space<vmem>>, vector<1x128xf32>
      %52 = vector.shape_cast %51 : vector<1x128xf32> to vector<1x1x128xf32>
      %cst_22 = arith.constant dense<0.000000e+00> : vector<1xf32>
      %53 = vector.multi_reduction <add>, %52, %cst_22 [1, 2] : vector<1x1x128xf32> to vector<1xf32>
      %54 = vector.shape_cast %53 : vector<1xf32> to vector<1x1x1xf32>
      %55 = vector.extract %54[0, 0, 0] : f32 from vector<1x1x1xf32>
      %cst_23 = arith.constant 6.250000e-02 : f32
      %56 = arith.mulf %55, %cst_23 : f32
      %c0_24 = arith.constant 0 : index
      %c0_25 = arith.constant 0 : index
      %57 = memref.load %arg4[%c0_24, %c0_25] : memref<1x1xf32, #tpu.memory_space<smem>>
      memref.store %56, %arg4[%c0_24, %c0_25] : memref<1x1xf32, #tpu.memory_space<smem>>
    } else {
    }
    return
  }
  func.func @transform_0(%arg0: i32) -> (i32, i32) {
    %c0_i32 = arith.constant 0 : i32
    %c0_i32_0 = arith.constant 0 : i32
    return %c0_i32, %arg0 : i32, i32
  }
  func.func @transform_1(%arg0: i32) -> (i32, i32) {
    %c0_i32 = arith.constant 0 : i32
    %c0_i32_0 = arith.constant 0 : i32
    return %c0_i32, %arg0 : i32, i32
  }
  func.func @transform_2(%arg0: i32) -> (i32, i32) {
    %c0_i32 = arith.constant 0 : i32
    %c0_i32_0 = arith.constant 0 : i32
    %c0_i32_1 = arith.constant 0 : i32
    return %c0_i32, %c0_i32_0 : i32, i32
  }
  func.func @transform_3(%arg0: i32) -> (i32, i32) {
    %c0_i32 = arith.constant 0 : i32
    %c0_i32_0 = arith.constant 0 : i32
    %c0_i32_1 = arith.constant 0 : i32
    return %c0_i32, %c0_i32_0 : i32, i32
  }
}

</mosaic_0001>

<llo_original>
// kernel: tpu_custom_call.1
$region0: #{tpu_custom_call.1}
  #allocation0 [shape = 'u32[]', space=smem, size = 0x4, offset = 0x4, fixed_abs, tag = 'smem constant byte address 0x4 - core index']
  #allocation1 [shape = 'u32[72,128]{1,0:T(1,128)}', space=vmem, size = 0x9000, scoped, tag = 'internal scratch']
  #allocation2 [shape = 'f32[1,128]{1,0:T(1,128)}', space=vmem, size = 0x200, scoped, tag = 'scratch operand']
  %s0 = inlined_call_operand.vmem [shape: f32[8,128], index: 0, kind: input, shape index: {}]
  %s1 = inlined_call_operand.vmem [shape: s32[1,128], index: 1, kind: input, shape index: {}]
  %s2 = inlined_call_operand.vmem [shape: f32[8,1], index: 2, kind: input, shape index: {}]
  %s3 = inlined_call_operand.hbm [shape: f32[1,1], index: 3, kind: output, shape index: {}]
  %s4 = sld [smem:[#allocation0]]
  $region30: #{tpu_custom_call.1} parent=0
    _
  %s6 = ssub.s32 1, %s4
  %s7 = scalar_select 0, %s6, %s4
  $region1: #{tpu_custom_call.1} parent=0
    #allocation3 [shape = 'u8[512]{0}', space=smem, size = 0x200, scoped, tag = 'output window, operand 0, single buffered']
    #allocation4 [shape = 's32[1]{0}', space=sflag, size = 0x4, scoped, tag = 'scoped memory for tpu_custom_call.1']
    %8 = vsyncpa [#allocation4], 0
    // Predicated region
    $region2: #{tpu_custom_call.1} parent=1 // pred_check
      _
    $region3: #{tpu_custom_call.1} parent=1 // pred_check_branch
      %10 = sbr.rel (0) target = $region5
    $region4: #{tpu_custom_call.1} parent=1 // pred_region
      _
    $region5: #{tpu_custom_call.1} parent=1 // pred_fallthru
      _
    // Predicated region
    $region6: #{tpu_custom_call.1} parent=1 // pred_check
      _
    $region7: #{tpu_custom_call.1} parent=1 // pred_check_branch
      %12 = sbr.rel (0) target = $region9
    $region8: #{tpu_custom_call.1} parent=1 // pred_region
      _
    $region9: #{tpu_custom_call.1} parent=1 // pred_fallthru
      _
    // Predicated region
    $region10: #{tpu_custom_call.1} parent=1 // pred_check
      _
    $region11: #{tpu_custom_call.1} parent=1 // pred_check_branch
      %14 = sbr.rel (0) target = $region13
    $region12: #{tpu_custom_call.1} parent=1 // pred_region
      _
    $region13: #{tpu_custom_call.1} parent=1 // pred_fallthru
      _
    %v15 = vld [vmem:[%s0] sm:$0xff]
    %v16 = vld [vmem:[%s1] sm:$0x1]
    %v17 = vld [vmem:[%s2] sm:$0xff]
    %v18 = vrot.slane %v15, 4
    %v19 = vmax.f32 %v15, %v18
    %v20 = vrot.slane %v19, 2
    %v21 = vmax.f32 %v19, %v20
    %v22 = vrot.slane %v21, 1
    %v23 = vmax.f32 %v21, %v22
    %v24 = vsub.f32 %v15, %v23
    %v25 = vmul.f32 %v24, 1.442695
    %v26 = vpow.pop %v25
    %v27 = vrot.slane %v26, 4
    %v28 = vadd.f32 %v26, %v27
    %v29 = vrot.slane %v28, 2
    %v30 = vadd.f32 %v28, %v29
    %v31 = vrot.slane %v30, 1
    %v32 = vadd.f32 %v30, %v31
    %v33 = vlog2.pop %v32
    %v34 = vmul.f32 %v33, 0.6931472
    %v35 = vadd.f32 %v34, %v23
    %v36 = vlaneseq
    %v37 = vshrl.u32 %v36, 7
    %v38 = vperm.slane %v16, 0
    %vm39 = vcmp.eq.s32.totalorder %v37, %v38
    %v40 = vsel %vm39, %v15, 0.0
    %v41 = vrot.slane %v40, 4
    %v42 = vadd.f32 %v40, %v41
    %v43 = vrot.slane %v42, 2
    %v44 = vadd.f32 %v42, %v43
    %v45 = vrot.slane %v44, 1
    %v46 = vadd.f32 %v44, %v45
    %48 = vset.pattern.permute.xlu0 0
    %49 = vperm.xlu0 %48, %v17
    %v50 = vpop.permute.xlu0 %49
    %v52 = vsel %vm39, %v50, 0.0
    %v53 = vrot.slane %v52, 4
    %v54 = vadd.f32 %v52, %v53
    %v55 = vrot.slane %v54, 2
    %v56 = vadd.f32 %v54, %v55
    %v57 = vrot.slane %v56, 1
    %v58 = vadd.f32 %v56, %v57
    %v59 = vsub.f32 %v35, %v46
    %v60 = vmul.f32 %v58, %v59
    %v61 = vsub.f32 0.0, %v60
    %v62 = vmul.f32 %v61, 1.442695
    %v63 = vpow.pop %v62
    %v64 = vsub.f32 1.0, %v63
    %v65 = vmul.f32 %v64, %v64
    %v66 = vmul.f32 %v65, %v60
    %v67 = vlaneseq
    %v68 = vand.u32 %v67, 127
    %s69 = smul.u32 0, 128
    %v70 = vstv %s69
    %v71 = vadd.s32 %v68, %v70
    %vm72 = vcmp.lt.s32.totalorder %v71, 16
    %v73 = vsel %vm72, %v66, 0.0
    %p74 = scmp.eq.s32.totalorder 0, 0
    // Predicated region
    $region14: #{tpu_custom_call.1} parent=1 // pred_check
      %p75 = pneg %p74
    $region15: #{tpu_custom_call.1} parent=1 // pred_check_branch
      %77 = sbr.rel (%p75) target = $region17
    $region16: #{tpu_custom_call.1} parent=1 // pred_region
      %78 = vst [vmem:[#allocation2] sm:$0x1] 0.0
    $region17: #{tpu_custom_call.1} parent=1 // pred_fallthru
      _
    %v79 = vld [vmem:[#allocation2] sm:$0x1]
    %v80 = vadd.f32 %v79, %v73
    %81 = vst [vmem:[#allocation2] sm:$0x1] %v80
    // Predicated region
    $region18: #{tpu_custom_call.1} parent=1 // pred_check
      %p82 = pneg %p74
    $region19: #{tpu_custom_call.1} parent=1 // pred_check_branch
      %84 = sbr.rel (%p82) target = $region21
    $region20: #{tpu_custom_call.1} parent=1 // pred_region
      %v85 = vld [vmem:[#allocation2] sm:$0x1]
      %vm86 = vcmask 1040384
      %v87 = vsel %vm86, %v85, 0.0
      %88 = vadd.xlane.f32.xlu0 %v87
      %v89 = vpop.xlane.xlu0 %88
      %v90 = vrot.slane %v89, 4
      %v91 = vadd.f32 %v89, %v90
      %v92 = vrot.slane %v91, 2
      %v93 = vadd.f32 %v91, %v92
      %v94 = vrot.slane %v93, 1
      %v95 = vadd.f32 %v93, %v94
      %s96 = vtos %v95
      %s97 = smul.f32 %s96, 0.0625
      %s98 = scalar_lea.smem [#allocation3], 0
      %99 = sst [smem:[%s98]] %s97
    $region21: #{tpu_custom_call.1} parent=1 // pred_fallthru
      _
    // Predicated region
    $region22: #{tpu_custom_call.1} parent=1 // pred_check
      _
    $region23: #{tpu_custom_call.1} parent=1 // pred_check_branch
      %101 = sbr.rel (0) target = $region25
    $region24: #{tpu_custom_call.1} parent=1 // pred_region
      %103 = vsyncadd [#allocation4], 0
      %s105 = sshll.u32 %s3, 4
      %s106 = int_to_ptr.hbm [resolvable:$true] %s105
      %108 = dma.smem_to_hbm [#allocation3], 16, %s106, [#allocation4]
    $region25: #{tpu_custom_call.1} parent=1 // pred_fallthru
      _
    // Predicated region
    $region26: #{tpu_custom_call.1} parent=1 // pred_check
      _
    $region27: #{tpu_custom_call.1} parent=1 // pred_check_branch
      %110 = sbr.rel (0) target = $region29
    $region28: #{tpu_custom_call.1} parent=1 // pred_region
      %112 = dma.done [#allocation4], 16
    $region29: #{tpu_custom_call.1} parent=1 // pred_fallthru
      _
    %113 = sfence
    %114 = vsyncpa [#allocation4], 1

</llo_original>
